<compile_context>
chip_gen: v7x
topology: tpu7x:2x2x1
jax: 0.10.0
libtpu: 0.0.40
codegen_flags: <defaults>
</compile_context>

<pallas_src>
import jax
import jax.numpy as jnp
from jax.experimental import pallas as pl
from jax.experimental.pallas import tpu as pltpu

BERT_HIDDEN = 768
NUM_FEATURES = 3
FC_NUM_OUT = 64
FC_COMB_OUT = 256
N_CLASSES = 3
N_OUT_PAD = 8           # narrow f32 output slab (block last dim == full array dim)
W3_PAD = 128            # w3 matmul kept at native MXU width
DEFAULT_TILE_B_CAP = 1024  # batch-tile cap (rows); ~10-12 MiB VMEM at this size


def _round_up(x, m):
    return ((x + m - 1) // m) * m


def _cdiv(a, b):
    return -(-a // b)


def _pick_tiling(batch, cap):
    """Pick (tile_b, num_steps, padded_batch) with small padding waste and
    >= 2 grid steps whenever the batch allows (so both v7x cores get work)."""
    b16 = _round_up(max(batch, 1), 16)           # 16: bf16 sublane packing inside kernel
    steps = max(_cdiv(b16, cap), 2 if b16 >= 32 else 1)
    tb = min(cap, _round_up(_cdiv(b16, steps), 16))
    steps = _cdiv(b16, tb)
    return tb, steps, steps * tb


def _batch_dim_semantics(num_steps):
    """CORE_PARALLEL only on v7x with a multi-step grid; plain parallel elsewhere."""
    try:
        kind = jax.devices()[0].device_kind.lower()
    except Exception:
        kind = ""
    if num_steps >= 2 and ("v7" in kind or "7x" in kind):
        return (pltpu.CORE_PARALLEL,)
    return ("parallel",)


def combined_head_kernel(pooled_ref, numeric_ref,
                         w1_ref, b1_ref,
                         w2a_ref, w2b_ref, b2_ref,
                         w3_ref, b3_ref,
                         out_ref):
    # --- numeric branch: relu(numeric @ W1 + b1) -> [TB, 64] ------------------
    # K=3 matmul would waste >97% of the MXU and contend with the real matmuls'
    # vector-extended slot; do it as three VPU broadcast-FMAs instead.
    n = numeric_ref[...]                          # [TB, 3]  f32
    w1 = w1_ref[...]                              # [3, 64]  f32
    num_out = (n[:, 0:1] * w1[0:1, :]
               + n[:, 1:2] * w1[1:2, :]
               + n[:, 2:3] * w1[2:3, :]
               + b1_ref[...])
    num_out = jnp.maximum(num_out, 0.0)           # [TB, 64] f32

    # --- fc_combined on concat([pooled, num_out], 1) without the concat -------
    #   cat @ W2 = pooled @ W2[:768] + num_out @ W2[768:]
    # pooled arrives f32 from HBM and is cast to bf16 here (VPU, no extra HBM
    # pass); f32 accumulation on the MXU.
    pooled_bf = pooled_ref[...].astype(jnp.bfloat16)           # [TB, 768]
    combined = (jnp.dot(pooled_bf, w2a_ref[...],
                        preferred_element_type=jnp.float32)
                + jnp.dot(num_out.astype(jnp.bfloat16), w2b_ref[...],
                          preferred_element_type=jnp.float32)
                + b2_ref[...])
    combined = jnp.maximum(combined, 0.0)         # [TB, 256] f32

    # --- output layer (no activation) -----------------------------------------
    # Matmul stays at the native 128-wide MXU width (zero-padded columns), but
    # only the first N_OUT_PAD columns are written back to HBM.
    y = (jnp.dot(combined.astype(jnp.bfloat16), w3_ref[...],
                 preferred_element_type=jnp.float32)
         + b3_ref[...])                           # [TB, 128] f32
    out_ref[...] = y[:, :N_OUT_PAD].astype(out_ref.dtype)


def prepare_params(params):
    """One-time weight preprocessing (hoisted out of the per-call forward)."""
    w1, b1, w2, b2, w3, b3 = (params[k] for k in
                              ("w1", "b1", "w2", "b2", "w3", "b3"))
    w3p = jnp.zeros((FC_COMB_OUT, W3_PAD), jnp.bfloat16)
    w3p = w3p.at[:, :N_CLASSES].set(w3.astype(jnp.bfloat16))
    b3p = jnp.zeros((1, W3_PAD), jnp.float32).at[:, :N_CLASSES].set(b3)
    return dict(
        w1=w1.astype(jnp.float32),                               # [3, 64]
        b1=b1.reshape(1, FC_NUM_OUT).astype(jnp.float32),        # [1, 64]
        w2a=w2[:BERT_HIDDEN, :].astype(jnp.bfloat16),            # [768, 256]
        w2b=w2[BERT_HIDDEN:, :].astype(jnp.bfloat16),            # [ 64, 256]
        b2=b2.reshape(1, FC_COMB_OUT).astype(jnp.float32),       # [1, 256]
        w3p=w3p,                                                 # [256, 128] bf16
        b3p=b3p,                                                 # [1, 128]   f32
    )


def combined_model_forward(pooled, numeric, prep, *, tile_b_cap=DEFAULT_TILE_B_CAP):
    """Head of CombinedModel.forward; `pooled` plays the role of BERT output[1]."""
    B = pooled.shape[0]
    tb, steps, b_pad = _pick_tiling(B, tile_b_cap)

    if b_pad != B:
        pooled = jnp.pad(pooled, ((0, b_pad - B), (0, 0)))
        numeric = jnp.pad(numeric, ((0, b_pad - B), (0, 0)))
    numeric = numeric.astype(jnp.float32)

    const2 = lambda i: (0, 0)   # weights/biases: same block every step -> DMA'd once

    flops = 2 * b_pad * (NUM_FEATURES * FC_NUM_OUT
                         + BERT_HIDDEN * FC_COMB_OUT
                         + FC_NUM_OUT * FC_COMB_OUT
                         + FC_COMB_OUT * W3_PAD)
    bytes_accessed = (b_pad * BERT_HIDDEN * 4            # pooled (f32)
                      + b_pad * NUM_FEATURES * 4         # numeric (f32)
                      + (BERT_HIDDEN + FC_NUM_OUT) * FC_COMB_OUT * 2
                      + FC_COMB_OUT * W3_PAD * 2
                      + (FC_NUM_OUT + FC_COMB_OUT + W3_PAD) * 4
                      + NUM_FEATURES * FC_NUM_OUT * 4
                      + b_pad * N_OUT_PAD * 4)           # output (narrow f32)

    out = pl.pallas_call(
        combined_head_kernel,
        out_shape=jax.ShapeDtypeStruct((b_pad, N_OUT_PAD), jnp.float32),
        grid=(steps,),
        in_specs=[
            pl.BlockSpec((tb, BERT_HIDDEN), lambda i: (i, 0)),       # pooled (f32)
            pl.BlockSpec((tb, NUM_FEATURES), lambda i: (i, 0)),      # numeric (f32)
            pl.BlockSpec((NUM_FEATURES, FC_NUM_OUT), const2),        # w1
            pl.BlockSpec((1, FC_NUM_OUT), const2),                   # b1
            pl.BlockSpec((BERT_HIDDEN, FC_COMB_OUT), const2),        # w2a (bf16)
            pl.BlockSpec((FC_NUM_OUT, FC_COMB_OUT), const2),         # w2b (bf16)
            pl.BlockSpec((1, FC_COMB_OUT), const2),                  # b2
            pl.BlockSpec((FC_COMB_OUT, W3_PAD), const2),             # w3 (bf16, padded)
            pl.BlockSpec((1, W3_PAD), const2),                       # b3 (padded)
        ],
        out_specs=pl.BlockSpec((tb, N_OUT_PAD), lambda i: (i, 0)),
        compiler_params=pltpu.CompilerParams(
            dimension_semantics=_batch_dim_semantics(steps),
            vmem_limit_bytes=32 * 1024 * 1024,
        ),
        cost_estimate=pl.CostEstimate(flops=flops, transcendentals=0,
                                      bytes_accessed=bytes_accessed),
    )(pooled, numeric, prep["w1"], prep["b1"], prep["w2a"], prep["w2b"],
      prep["b2"], prep["w3p"], prep["b3p"])

    return out[:B, :N_CLASSES]


def init_params(key):
    """Deterministic init; weights stored as [in, out] = PyTorch weight.T."""
    ks = jax.random.split(key, 6)

    def lin(kw, kb, fan_in, fan_out):
        bound = 1.0 / jnp.sqrt(jnp.float32(fan_in))
        w = jax.random.uniform(kw, (fan_in, fan_out), jnp.float32, -bound, bound)
        b = jax.random.uniform(kb, (fan_out,), jnp.float32, -bound, bound)
        return w, b

    w1, b1 = lin(ks[0], ks[1], NUM_FEATURES, FC_NUM_OUT)               # fc_numeric
    w2, b2 = lin(ks[2], ks[3], BERT_HIDDEN + FC_NUM_OUT, FC_COMB_OUT)  # fc_combined
    w3, b3 = lin(ks[4], ks[5], FC_COMB_OUT, N_CLASSES)                 # output_layer
    return dict(w1=w1, b1=b1, w2=w2, b2=b2, w3=w3, b3=b3)


def reference_forward(pooled, numeric, p):
    """Pure-JAX f32 reference matching the PyTorch forward semantics."""
    num_out = jax.nn.relu(numeric @ p["w1"] + p["b1"])
    combined = jnp.concatenate([pooled, num_out], axis=1)
    combined = jax.nn.relu(combined @ p["w2"] + p["b2"])
    return combined @ p["w3"] + p["b3"]


if __name__ == "__main__":
    key = jax.random.PRNGKey(0)
    k_pool, k_num, k_param = jax.random.split(key, 3)

    B = 2
    pooled = jax.random.normal(k_pool, (B, BERT_HIDDEN), jnp.float32)
    numeric = jax.random.normal(k_num, (B, NUM_FEATURES), jnp.float32)
    params = init_params(k_param)
    prep = prepare_params(params)          # one-time weight preprocessing

    out = combined_model_forward(pooled, numeric, prep)
    out = jax.block_until_ready(out)

    ref = reference_forward(pooled, numeric, params)
    assert out.shape == (B, N_CLASSES)
    # bf16 MXU operands with f32 accumulation vs. pure-f32 reference.
    assert jnp.allclose(out, ref, atol=3e-2, rtol=3e-2), (out, ref)

    print("KERNEL_OK")
</pallas_src>

<mosaic_0001>
module attributes {stable_mosaic.version = 11 : i64} {
  func.func @combined_head_kernel(%arg0: i32, %arg1: memref<16x768xf32, #tpu.memory_space<vmem>>, %arg2: memref<16x3xf32, #tpu.memory_space<vmem>>, %arg3: memref<3x64xf32, #tpu.memory_space<vmem>>, %arg4: memref<1x64xf32, #tpu.memory_space<vmem>>, %arg5: memref<768x256xbf16, #tpu.memory_space<vmem>>, %arg6: memref<64x256xbf16, #tpu.memory_space<vmem>>, %arg7: memref<1x256xf32, #tpu.memory_space<vmem>>, %arg8: memref<256x128xbf16, #tpu.memory_space<vmem>>, %arg9: memref<1x128xf32, #tpu.memory_space<vmem>>, %arg10: memref<16x8xf32, #tpu.memory_space<vmem>>) attributes {dimension_semantics = [#tpu.dimension_semantics<parallel>], iteration_bounds = array<i64: 1>, scalar_prefetch = 0 : i64, scratch_operands = 0 : i64, tpu.core_type = #tpu.core_type<tc>, window_params = [{transform_indices = @transform_0, window_bounds = array<i64: 16, 768>}, {transform_indices = @transform_1, window_bounds = array<i64: 16, 3>}, {pipeline_mode = #tpu.pipeline_mode<synchronous>, transform_indices = @transform_2, window_bounds = array<i64: 3, 64>}, {pipeline_mode = #tpu.pipeline_mode<synchronous>, transform_indices = @transform_3, window_bounds = array<i64: 1, 64>}, {pipeline_mode = #tpu.pipeline_mode<synchronous>, transform_indices = @transform_4, window_bounds = array<i64: 768, 256>}, {pipeline_mode = #tpu.pipeline_mode<synchronous>, transform_indices = @transform_5, window_bounds = array<i64: 64, 256>}, {pipeline_mode = #tpu.pipeline_mode<synchronous>, transform_indices = @transform_6, window_bounds = array<i64: 1, 256>}, {pipeline_mode = #tpu.pipeline_mode<synchronous>, transform_indices = @transform_7, window_bounds = array<i64: 256, 128>}, {pipeline_mode = #tpu.pipeline_mode<synchronous>, transform_indices = @transform_8, window_bounds = array<i64: 1, 128>}, {transform_indices = @transform_9, window_bounds = array<i64: 16, 8>}]} {
    %c0 = arith.constant 0 : index
    %c0_0 = arith.constant 0 : index
    %0 = vector.load %arg2[%c0, %c0_0] : memref<16x3xf32, #tpu.memory_space<vmem>>, vector<16x3xf32>
    %c0_1 = arith.constant 0 : index
    %c0_2 = arith.constant 0 : index
    %1 = vector.load %arg3[%c0_1, %c0_2] : memref<3x64xf32, #tpu.memory_space<vmem>>, vector<3x64xf32>
    %2 = vector.extract_strided_slice %0 {offsets = [0, 0], sizes = [16, 1], strides = [1, 1]} : vector<16x3xf32> to vector<16x1xf32>
    %3 = vector.extract_strided_slice %1 {offsets = [0, 0], sizes = [1, 64], strides = [1, 1]} : vector<3x64xf32> to vector<1x64xf32>
    %4 = vector.broadcast %2 : vector<16x1xf32> to vector<16x64xf32>
    %5 = vector.broadcast %3 : vector<1x64xf32> to vector<16x64xf32>
    %6 = arith.mulf %4, %5 : vector<16x64xf32>
    %7 = vector.extract_strided_slice %0 {offsets = [0, 1], sizes = [16, 1], strides = [1, 1]} : vector<16x3xf32> to vector<16x1xf32>
    %8 = vector.extract_strided_slice %1 {offsets = [1, 0], sizes = [1, 64], strides = [1, 1]} : vector<3x64xf32> to vector<1x64xf32>
    %9 = vector.broadcast %7 : vector<16x1xf32> to vector<16x64xf32>
    %10 = vector.broadcast %8 : vector<1x64xf32> to vector<16x64xf32>
    %11 = arith.mulf %9, %10 : vector<16x64xf32>
    %12 = arith.addf %6, %11 : vector<16x64xf32>
    %13 = vector.extract_strided_slice %0 {offsets = [0, 2], sizes = [16, 1], strides = [1, 1]} : vector<16x3xf32> to vector<16x1xf32>
    %14 = vector.extract_strided_slice %1 {offsets = [2, 0], sizes = [1, 64], strides = [1, 1]} : vector<3x64xf32> to vector<1x64xf32>
    %15 = vector.broadcast %13 : vector<16x1xf32> to vector<16x64xf32>
    %16 = vector.broadcast %14 : vector<1x64xf32> to vector<16x64xf32>
    %17 = arith.mulf %15, %16 : vector<16x64xf32>
    %18 = arith.addf %12, %17 : vector<16x64xf32>
    %c0_3 = arith.constant 0 : index
    %c0_4 = arith.constant 0 : index
    %19 = vector.load %arg4[%c0_3, %c0_4] : memref<1x64xf32, #tpu.memory_space<vmem>>, vector<1x64xf32>
    %20 = vector.broadcast %19 : vector<1x64xf32> to vector<16x64xf32>
    %21 = arith.addf %18, %20 : vector<16x64xf32>
    %cst = arith.constant 0.000000e+00 : f32
    %22 = vector.broadcast %cst : f32 to vector<16x64xf32>
    %23 = arith.maximumf %21, %22 : vector<16x64xf32>
    %c0_5 = arith.constant 0 : index
    %c0_6 = arith.constant 0 : index
    %24 = vector.load %arg1[%c0_5, %c0_6] : memref<16x768xf32, #tpu.memory_space<vmem>>, vector<16x768xf32>
    %25 = arith.truncf %24 : vector<16x768xf32> to vector<16x768xbf16>
    %c0_7 = arith.constant 0 : index
    %c0_8 = arith.constant 0 : index
    %26 = vector.load %arg5[%c0_7, %c0_8] : memref<768x256xbf16, #tpu.memory_space<vmem>>, vector<768x256xbf16>
    %cst_9 = arith.constant dense<0.000000e+00> : vector<16x256xf32>
    %27 = tpu.matmul %25, %26, %cst_9 {dimension_numbers = #tpu.dot_dimension_numbers<[1], [0], [0], [1], [0, 0, 1, 1], [], []>} : vector<16x768xbf16>, vector<768x256xbf16>, vector<16x256xf32> -> vector<16x256xf32>
    %28 = arith.truncf %23 : vector<16x64xf32> to vector<16x64xbf16>
    %c0_10 = arith.constant 0 : index
    %c0_11 = arith.constant 0 : index
    %29 = vector.load %arg6[%c0_10, %c0_11] : memref<64x256xbf16, #tpu.memory_space<vmem>>, vector<64x256xbf16>
    %cst_12 = arith.constant dense<0.000000e+00> : vector<16x256xf32>
    %30 = tpu.matmul %28, %29, %cst_12 {dimension_numbers = #tpu.dot_dimension_numbers<[1], [0], [0], [1], [0, 0, 1, 1], [], []>} : vector<16x64xbf16>, vector<64x256xbf16>, vector<16x256xf32> -> vector<16x256xf32>
    %31 = arith.addf %27, %30 : vector<16x256xf32>
    %c0_13 = arith.constant 0 : index
    %c0_14 = arith.constant 0 : index
    %32 = vector.load %arg7[%c0_13, %c0_14] : memref<1x256xf32, #tpu.memory_space<vmem>>, vector<1x256xf32>
    %33 = vector.broadcast %32 : vector<1x256xf32> to vector<16x256xf32>
    %34 = arith.addf %31, %33 : vector<16x256xf32>
    %cst_15 = arith.constant 0.000000e+00 : f32
    %35 = vector.broadcast %cst_15 : f32 to vector<16x256xf32>
    %36 = arith.maximumf %34, %35 : vector<16x256xf32>
    %37 = arith.truncf %36 : vector<16x256xf32> to vector<16x256xbf16>
    %c0_16 = arith.constant 0 : index
    %c0_17 = arith.constant 0 : index
    %38 = vector.load %arg8[%c0_16, %c0_17] : memref<256x128xbf16, #tpu.memory_space<vmem>>, vector<256x128xbf16>
    %cst_18 = arith.constant dense<0.000000e+00> : vector<16x128xf32>
    %39 = tpu.matmul %37, %38, %cst_18 {dimension_numbers = #tpu.dot_dimension_numbers<[1], [0], [0], [1], [0, 0, 1, 1], [], []>} : vector<16x256xbf16>, vector<256x128xbf16>, vector<16x128xf32> -> vector<16x128xf32>
    %c0_19 = arith.constant 0 : index
    %c0_20 = arith.constant 0 : index
    %40 = vector.load %arg9[%c0_19, %c0_20] : memref<1x128xf32, #tpu.memory_space<vmem>>, vector<1x128xf32>
    %41 = vector.broadcast %40 : vector<1x128xf32> to vector<16x128xf32>
    %42 = arith.addf %39, %41 : vector<16x128xf32>
    %43 = vector.extract_strided_slice %42 {offsets = [0, 0], sizes = [16, 8], strides = [1, 1]} : vector<16x128xf32> to vector<16x8xf32>
    %c0_21 = arith.constant 0 : index
    %c0_22 = arith.constant 0 : index
    %44 = vector.load %arg10[%c0_21, %c0_22] : memref<16x8xf32, #tpu.memory_space<vmem>>, vector<16x8xf32>
    tpu.vector_store %arg10[%c0_21, %c0_22], %43 {strides = array<i32>} : memref<16x8xf32, #tpu.memory_space<vmem>>, vector<16x8xf32>,
    return
  }
  func.func @transform_0(%arg0: i32) -> (i32, i32) {
    %c0_i32 = arith.constant 0 : i32
    %c0_i32_0 = arith.constant 0 : i32
    return %arg0, %c0_i32 : i32, i32
  }
  func.func @transform_1(%arg0: i32) -> (i32, i32) {
    %c0_i32 = arith.constant 0 : i32
    %c0_i32_0 = arith.constant 0 : i32
    return %arg0, %c0_i32 : i32, i32
  }
  func.func @transform_2(%arg0: i32) -> (i32, i32) {
    %c0_i32 = arith.constant 0 : i32
    %c0_i32_0 = arith.constant 0 : i32
    %c0_i32_1 = arith.constant 0 : i32
    return %c0_i32, %c0_i32_0 : i32, i32
  }
  func.func @transform_3(%arg0: i32) -> (i32, i32) {
    %c0_i32 = arith.constant 0 : i32
    %c0_i32_0 = arith.constant 0 : i32
    %c0_i32_1 = arith.constant 0 : i32
    return %c0_i32, %c0_i32_0 : i32, i32
  }
  func.func @transform_4(%arg0: i32) -> (i32, i32) {
    %c0_i32 = arith.constant 0 : i32
    %c0_i32_0 = arith.constant 0 : i32
    %c0_i32_1 = arith.constant 0 : i32
    return %c0_i32, %c0_i32_0 : i32, i32
  }
  func.func @transform_5(%arg0: i32) -> (i32, i32) {
    %c0_i32 = arith.constant 0 : i32
    %c0_i32_0 = arith.constant 0 : i32
    %c0_i32_1 = arith.constant 0 : i32
    return %c0_i32, %c0_i32_0 : i32, i32
  }
  func.func @transform_6(%arg0: i32) -> (i32, i32) {
    %c0_i32 = arith.constant 0 : i32
    %c0_i32_0 = arith.constant 0 : i32
    %c0_i32_1 = arith.constant 0 : i32
    return %c0_i32, %c0_i32_0 : i32, i32
  }
  func.func @transform_7(%arg0: i32) -> (i32, i32) {
    %c0_i32 = arith.constant 0 : i32
    %c0_i32_0 = arith.constant 0 : i32
    %c0_i32_1 = arith.constant 0 : i32
    return %c0_i32, %c0_i32_0 : i32, i32
  }
  func.func @transform_8(%arg0: i32) -> (i32, i32) {
    %c0_i32 = arith.constant 0 : i32
    %c0_i32_0 = arith.constant 0 : i32
    %c0_i32_1 = arith.constant 0 : i32
    return %c0_i32, %c0_i32_0 : i32, i32
  }
  func.func @transform_9(%arg0: i32) -> (i32, i32) {
    %c0_i32 = arith.constant 0 : i32
    %c0_i32_0 = arith.constant 0 : i32
    return %arg0, %c0_i32 : i32, i32
  }
}

</mosaic_0001>

<llo_original>
// kernel: tpu_custom_call.1
$region0: #{tpu_custom_call.1}
  #allocation0 [shape = 'u32[]', space=smem, size = 0x4, offset = 0x4, fixed_abs, tag = 'smem constant byte address 0x4 - core index']
  #allocation1 [shape = 'u32[144,128]{1,0:T(1,128)}', space=vmem, size = 0x12000, scoped, tag = 'internal scratch']
  %s0 = inlined_call_operand.hbm [shape: f32[16,768], index: 0, kind: input, shape index: {}]
  %s1 = inlined_call_operand.vmem [shape: f32[16,3], index: 1, kind: input, shape index: {}]
  %s2 = inlined_call_operand.vmem [shape: f32[3,64], index: 2, kind: input, shape index: {}]
  %s3 = inlined_call_operand.vmem [shape: f32[1,64], index: 3, kind: input, shape index: {}]
  %s4 = inlined_call_operand.hbm [shape: bf16[768,256], index: 4, kind: input, shape index: {}]
  %s5 = inlined_call_operand.hbm [shape: bf16[64,256], index: 5, kind: input, shape index: {}]
  %s6 = inlined_call_operand.vmem [shape: f32[1,256], index: 6, kind: input, shape index: {}]
  %s7 = inlined_call_operand.hbm [shape: bf16[256,128], index: 7, kind: input, shape index: {}]
  %s8 = inlined_call_operand.vmem [shape: f32[1,128], index: 8, kind: input, shape index: {}]
  %s9 = inlined_call_operand.vmem [shape: f32[16,8], index: 9, kind: output, shape index: {}]
  %s10 = sld [smem:[#allocation0]]
  $region62: #{tpu_custom_call.1} parent=0
    _
  %s12 = ssub.s32 1, %s10
  %s13 = scalar_select 0, %s12, %s10
  $region1: #{tpu_custom_call.1} parent=0
    #allocation2 [shape = 'u8[49152]{0}', space=vmem, size = 0xc000, scoped, tag = 'input window, operand 0, single buffered']
    #allocation3 [shape = 's32[1]{0}', space=sflag, size = 0x4, scoped, tag = 'scoped memory for tpu_custom_call.1']
    #allocation4 [shape = 'u8[393216]{0}', space=vmem, size = 0x60000, scoped, tag = 'input window, operand 4, single buffered']
    #allocation5 [shape = 's32[1]{0}', space=sflag, size = 0x4, scoped, tag = 'scoped memory for tpu_custom_call.1']
    #allocation6 [shape = 'u8[32768]{0}', space=vmem, size = 0x8000, scoped, tag = 'input window, operand 5, single buffered']
    #allocation7 [shape = 'u8[65536]{0}', space=vmem, size = 0x10000, scoped, tag = 'input window, operand 7, single buffered']
    #allocation8 [shape = 's32[1]{0}', space=sflag, size = 0x4, scoped, tag = 'scoped memory for tpu_custom_call.1']
    %14 = vsyncpa [#allocation3], 0
    %15 = vsyncpa [#allocation5], 0
    %16 = vsyncpa [#allocation8], 0
    // Predicated region
    $region2: #{tpu_custom_call.1} parent=1 // pred_check
      _
    $region3: #{tpu_custom_call.1} parent=1 // pred_check_branch
      %18 = sbr.rel (0) target = $region5
    $region4: #{tpu_custom_call.1} parent=1 // pred_region
      %s20 = ssub.s32 1536, 1536
      %21 = vsyncadd [#allocation3], %s20
      %s22 = sshll.u32 [#allocation2], 4
      %s23 = int_to_ptr.vmem [resolvable:$true] %s22
      %28 = dma.hbm_to_vmem [thread:$0]  %s0, 1536, %s23, [#allocation3], 768, 768, 48
    $region5: #{tpu_custom_call.1} parent=1 // pred_fallthru
      _
    // Predicated region
    $region6: #{tpu_custom_call.1} parent=1 // pred_check
      _
    $region7: #{tpu_custom_call.1} parent=1 // pred_check_branch
      %30 = sbr.rel (0) target = $region9
    $region8: #{tpu_custom_call.1} parent=1 // pred_region
      _
    $region9: #{tpu_custom_call.1} parent=1 // pred_fallthru
      _
    // Predicated region
    $region10: #{tpu_custom_call.1} parent=1 // pred_check
      _
    $region11: #{tpu_custom_call.1} parent=1 // pred_check_branch
      %32 = sbr.rel (0) target = $region13
    $region12: #{tpu_custom_call.1} parent=1 // pred_region
      _
    $region13: #{tpu_custom_call.1} parent=1 // pred_fallthru
      _
    // Predicated region
    $region14: #{tpu_custom_call.1} parent=1 // pred_check
      _
    $region15: #{tpu_custom_call.1} parent=1 // pred_check_branch
      %34 = sbr.rel (0) target = $region17
    $region16: #{tpu_custom_call.1} parent=1 // pred_region
      _
    $region17: #{tpu_custom_call.1} parent=1 // pred_fallthru
      _
    // Predicated region
    $region18: #{tpu_custom_call.1} parent=1 // pred_check
      _
    $region19: #{tpu_custom_call.1} parent=1 // pred_check_branch
      %36 = sbr.rel (0) target = $region21
    $region20: #{tpu_custom_call.1} parent=1 // pred_region
      %s38 = ssub.s32 12288, 12288
      %39 = vsyncadd [#allocation5], %s38
      %s40 = sshll.u32 [#allocation4], 4
      %s41 = int_to_ptr.vmem [resolvable:$true] %s40
      %46 = dma.hbm_to_vmem [thread:$0]  %s4, 12288, %s41, [#allocation5], 128, 128, 8
    $region21: #{tpu_custom_call.1} parent=1 // pred_fallthru
      _
    // Predicated region
    $region22: #{tpu_custom_call.1} parent=1 // pred_check
      _
    $region23: #{tpu_custom_call.1} parent=1 // pred_check_branch
      %48 = sbr.rel (0) target = $region25
    $region24: #{tpu_custom_call.1} parent=1 // pred_region
      %s50 = ssub.s32 1024, 1024
      %51 = vsyncadd [#allocation5], %s50
      %s52 = sshll.u32 [#allocation6], 4
      %s53 = int_to_ptr.vmem [resolvable:$true] %s52
      %58 = dma.hbm_to_vmem [thread:$0]  %s5, 1024, %s53, [#allocation5], 128, 128, 8
    $region25: #{tpu_custom_call.1} parent=1 // pred_fallthru
      _
    // Predicated region
    $region26: #{tpu_custom_call.1} parent=1 // pred_check
      _
    $region27: #{tpu_custom_call.1} parent=1 // pred_check_branch
      %60 = sbr.rel (0) target = $region29
    $region28: #{tpu_custom_call.1} parent=1 // pred_region
      _
    $region29: #{tpu_custom_call.1} parent=1 // pred_fallthru
      _
    // Predicated region
    $region30: #{tpu_custom_call.1} parent=1 // pred_check
      _
    $region31: #{tpu_custom_call.1} parent=1 // pred_check_branch
      %62 = sbr.rel (0) target = $region33
    $region32: #{tpu_custom_call.1} parent=1 // pred_region
      %s64 = ssub.s32 2048, 2048
      %65 = vsyncadd [#allocation8], %s64
      %s66 = sshll.u32 [#allocation7], 4
      %s67 = int_to_ptr.vmem [resolvable:$true] %s66
      %72 = dma.hbm_to_vmem [thread:$0]  %s7, 2048, %s67, [#allocation8], 64, 64, 4
    $region33: #{tpu_custom_call.1} parent=1 // pred_fallthru
      _
    // Predicated region
    $region34: #{tpu_custom_call.1} parent=1 // pred_check
      _
    $region35: #{tpu_custom_call.1} parent=1 // pred_check_branch
      %74 = sbr.rel (0) target = $region37
    $region36: #{tpu_custom_call.1} parent=1 // pred_region
      _
    $region37: #{tpu_custom_call.1} parent=1 // pred_fallthru
      _
    // Predicated region
    $region38: #{tpu_custom_call.1} parent=1 // pred_check
      _
    $region39: #{tpu_custom_call.1} parent=1 // pred_check_branch
      %76 = sbr.rel (0) target = $region41
    $region40: #{tpu_custom_call.1} parent=1 // pred_region
      %77 = dma.done [#allocation3], 1536
    $region41: #{tpu_custom_call.1} parent=1 // pred_fallthru
      _
    // Predicated region
    $region42: #{tpu_custom_call.1} parent=1 // pred_check
      _
    $region43: #{tpu_custom_call.1} parent=1 // pred_check_branch
      %79 = sbr.rel (0) target = $region45
    $region44: #{tpu_custom_call.1} parent=1 // pred_region
      %80 = dma.done [#allocation5], 12288
    $region45: #{tpu_custom_call.1} parent=1 // pred_fallthru
      _
    // Predicated region
    $region46: #{tpu_custom_call.1} parent=1 // pred_check
      _
    $region47: #{tpu_custom_call.1} parent=1 // pred_check_branch
      %82 = sbr.rel (0) target = $region49
    $region48: #{tpu_custom_call.1} parent=1 // pred_region
      %83 = dma.done [#allocation5], 1024
    $region49: #{tpu_custom_call.1} parent=1 // pred_fallthru
      _
    // Predicated region
    $region50: #{tpu_custom_call.1} parent=1 // pred_check
      _
    $region51: #{tpu_custom_call.1} parent=1 // pred_check_branch
      %85 = sbr.rel (0) target = $region53
    $region52: #{tpu_custom_call.1} parent=1 // pred_region
      %86 = dma.done [#allocation8], 2048
    $region53: #{tpu_custom_call.1} parent=1 // pred_fallthru
      _
    %v88 = vld [vmem:[%s1] sm:$0xff]
    %v89 = vld [vmem:[%s1 + $0x8] sm:$0xff]
    %v90 = vld [vmem:[%s2] sm:$0x7]
    %92 = vset.pattern.permute.xlu0 0
    %93 = vperm.xlu0 %92, %v88
    %v94 = vpop.permute.xlu0 %93
    %97 = vset.pattern.permute.xlu0 0
    %98 = vperm.xlu0 %97, %v89
    %v99 = vpop.permute.xlu0 %98
    %v101 = vlaneseq
    %v102 = vshrl.u32 %v101, 7
    %v103 = vsub.s32 0, %v102
    %v104 = vrot.slane %v90, %v103
    %v105 = vmul.f32 %v94, %v104
    %v106 = vmul.f32 %v99, %v104
    %107 = vset.pattern.permute.xlu0 1
    %108 = vperm.xlu0 %107, %v88
    %v109 = vpop.permute.xlu0 %108
    %111 = vset.pattern.permute.xlu0 1
    %112 = vperm.xlu0 %111, %v89
    %v113 = vpop.permute.xlu0 %112
    %v115 = vlaneseq
    %v116 = vshrl.u32 %v115, 7
    %v117 = vsub.s32 1, %v116
    %v118 = vrot.slane %v90, %v117
    %v119 = vmul.f32 %v109, %v118
    %v120 = vmul.f32 %v113, %v118
    %v121 = vadd.f32 %v105, %v119
    %v122 = vadd.f32 %v106, %v120
    %123 = vset.pattern.permute.xlu0 2
    %124 = vperm.xlu0 %123, %v88
    %v125 = vpop.permute.xlu0 %124
    %127 = vset.pattern.permute.xlu0 2
    %128 = vperm.xlu0 %127, %v89
    %v129 = vpop.permute.xlu0 %128
    %v131 = vlaneseq
    %v132 = vshrl.u32 %v131, 7
    %v133 = vsub.s32 2, %v132
    %v134 = vrot.slane %v90, %v133
    %v135 = vmul.f32 %v125, %v134
    %v136 = vmul.f32 %v129, %v134
    %v137 = vadd.f32 %v121, %v135
    %v138 = vadd.f32 %v122, %v136
    %v139 = vld [vmem:[%s3] sm:$0x1]
    %v141 = vlaneseq
    %v142 = vshrl.u32 %v141, 7
    %v143 = vsub.s32 0, %v142
    %v144 = vrot.slane %v139, %v143
    %v146 = vadd.f32 %v137, %v144
    %v147 = vadd.f32 %v138, %v144
    %v148 = vmax.f32 %v146, 0.0
    %v149 = vmax.f32 %v147, 0.0
    %v150 = vld [vmem:[#allocation2] sm:$0xff]
    %v151 = vld [vmem:[#allocation2 + $0x8] sm:$0xff]
    %v152 = vld [vmem:[#allocation2 + $0x10] sm:$0xff]
    %v153 = vld [vmem:[#allocation2 + $0x18] sm:$0xff]
    %v154 = vld [vmem:[#allocation2 + $0x20] sm:$0xff]
    %v155 = vld [vmem:[#allocation2 + $0x28] sm:$0xff]
    %v156 = vld [vmem:[#allocation2 + $0x30] sm:$0xff]
    %v157 = vld [vmem:[#allocation2 + $0x38] sm:$0xff]
    %v158 = vld [vmem:[#allocation2 + $0x40] sm:$0xff]
    %v159 = vld [vmem:[#allocation2 + $0x48] sm:$0xff]
    %v160 = vld [vmem:[#allocation2 + $0x50] sm:$0xff]
    %v161 = vld [vmem:[#allocation2 + $0x58] sm:$0xff]
    %v162 = vpack.c.bf16 %v156, %v150
    %v163 = vpack.c.bf16 %v157, %v151
    %v164 = vpack.c.bf16 %v158, %v152
    %v165 = vpack.c.bf16 %v159, %v153
    %v166 = vpack.c.bf16 %v160, %v154
    %v167 = vpack.c.bf16 %v161, %v155
    %v168 = vld [vmem:[#allocation4] sm:$0xff]
    %v169 = vld [vmem:[#allocation4 + $0x8] sm:$0xff]
    %v170 = vld [vmem:[#allocation4 + $0x10] sm:$0xff]
    %v171 = vld [vmem:[#allocation4 + $0x18] sm:$0xff]
    %v172 = vld [vmem:[#allocation4 + $0x20] sm:$0xff]
    %v173 = vld [vmem:[#allocation4 + $0x28] sm:$0xff]
    %v174 = vld [vmem:[#allocation4 + $0x30] sm:$0xff]
    %v175 = vld [vmem:[#allocation4 + $0x38] sm:$0xff]
    %v176 = vld [vmem:[#allocation4 + $0x40] sm:$0xff]
    %v177 = vld [vmem:[#allocation4 + $0x48] sm:$0xff]
    %v178 = vld [vmem:[#allocation4 + $0x50] sm:$0xff]
    %v179 = vld [vmem:[#allocation4 + $0x58] sm:$0xff]
    %v180 = vld [vmem:[#allocation4 + $0x60] sm:$0xff]
    %v181 = vld [vmem:[#allocation4 + $0x68] sm:$0xff]
    %v182 = vld [vmem:[#allocation4 + $0x70] sm:$0xff]
    %v183 = vld [vmem:[#allocation4 + $0x78] sm:$0xff]
    %v184 = vld [vmem:[#allocation4 + $0x80] sm:$0xff]
    %v185 = vld [vmem:[#allocation4 + $0x88] sm:$0xff]
    %v186 = vld [vmem:[#allocation4 + $0x90] sm:$0xff]
    %v187 = vld [vmem:[#allocation4 + $0x98] sm:$0xff]
    %v188 = vld [vmem:[#allocation4 + $0xa0] sm:$0xff]
    %v189 = vld [vmem:[#allocation4 + $0xa8] sm:$0xff]
    %v190 = vld [vmem:[#allocation4 + $0xb0] sm:$0xff]
    %v191 = vld [vmem:[#allocation4 + $0xb8] sm:$0xff]
    %v192 = vld [vmem:[#allocation4 + $0xc0] sm:$0xff]
    %v193 = vld [vmem:[#allocation4 + $0xc8] sm:$0xff]
    %v194 = vld [vmem:[#allocation4 + $0xd0] sm:$0xff]
    %v195 = vld [vmem:[#allocation4 + $0xd8] sm:$0xff]
    %v196 = vld [vmem:[#allocation4 + $0xe0] sm:$0xff]
    %v197 = vld [vmem:[#allocation4 + $0xe8] sm:$0xff]
    %v198 = vld [vmem:[#allocation4 + $0xf0] sm:$0xff]
    %v199 = vld [vmem:[#allocation4 + $0xf8] sm:$0xff]
    %v200 = vld [vmem:[#allocation4 + $0x100] sm:$0xff]
    %v201 = vld [vmem:[#allocation4 + $0x108] sm:$0xff]
    %v202 = vld [vmem:[#allocation4 + $0x110] sm:$0xff]
    %v203 = vld [vmem:[#allocation4 + $0x118] sm:$0xff]
    %v204 = vld [vmem:[#allocation4 + $0x120] sm:$0xff]
    %v205 = vld [vmem:[#allocation4 + $0x128] sm:$0xff]
    %v206 = vld [vmem:[#allocation4 + $0x130] sm:$0xff]
    %v207 = vld [vmem:[#allocation4 + $0x138] sm:$0xff]
    %v208 = vld [vmem:[#allocation4 + $0x140] sm:$0xff]
    %v209 = vld [vmem:[#allocation4 + $0x148] sm:$0xff]
    %v210 = vld [vmem:[#allocation4 + $0x150] sm:$0xff]
    %v211 = vld [vmem:[#allocation4 + $0x158] sm:$0xff]
    %v212 = vld [vmem:[#allocation4 + $0x160] sm:$0xff]
    %v213 = vld [vmem:[#allocation4 + $0x168] sm:$0xff]
    %v214 = vld [vmem:[#allocation4 + $0x170] sm:$0xff]
    %v215 = vld [vmem:[#allocation4 + $0x178] sm:$0xff]
    %v216 = vld [vmem:[#allocation4 + $0x180] sm:$0xff]
    %v217 = vld [vmem:[#allocation4 + $0x188] sm:$0xff]
    %v218 = vld [vmem:[#allocation4 + $0x190] sm:$0xff]
    %v219 = vld [vmem:[#allocation4 + $0x198] sm:$0xff]
    %v220 = vld [vmem:[#allocation4 + $0x1a0] sm:$0xff]
    %v221 = vld [vmem:[#allocation4 + $0x1a8] sm:$0xff]
    %v222 = vld [vmem:[#allocation4 + $0x1b0] sm:$0xff]
    %v223 = vld [vmem:[#allocation4 + $0x1b8] sm:$0xff]
    %v224 = vld [vmem:[#allocation4 + $0x1c0] sm:$0xff]
    %v225 = vld [vmem:[#allocation4 + $0x1c8] sm:$0xff]
    %v226 = vld [vmem:[#allocation4 + $0x1d0] sm:$0xff]
    %v227 = vld [vmem:[#allocation4 + $0x1d8] sm:$0xff]
    %v228 = vld [vmem:[#allocation4 + $0x1e0] sm:$0xff]
    %v229 = vld [vmem:[#allocation4 + $0x1e8] sm:$0xff]
    %v230 = vld [vmem:[#allocation4 + $0x1f0] sm:$0xff]
    %v231 = vld [vmem:[#allocation4 + $0x1f8] sm:$0xff]
    %v232 = vld [vmem:[#allocation4 + $0x200] sm:$0xff]
    %v233 = vld [vmem:[#allocation4 + $0x208] sm:$0xff]
    %v234 = vld [vmem:[#allocation4 + $0x210] sm:$0xff]
    %v235 = vld [vmem:[#allocation4 + $0x218] sm:$0xff]
    %v236 = vld [vmem:[#allocation4 + $0x220] sm:$0xff]
    %v237 = vld [vmem:[#allocation4 + $0x228] sm:$0xff]
    %v238 = vld [vmem:[#allocation4 + $0x230] sm:$0xff]
    %v239 = vld [vmem:[#allocation4 + $0x238] sm:$0xff]
    %v240 = vld [vmem:[#allocation4 + $0x240] sm:$0xff]
    %v241 = vld [vmem:[#allocation4 + $0x248] sm:$0xff]
    %v242 = vld [vmem:[#allocation4 + $0x250] sm:$0xff]
    %v243 = vld [vmem:[#allocation4 + $0x258] sm:$0xff]
    %v244 = vld [vmem:[#allocation4 + $0x260] sm:$0xff]
    %v245 = vld [vmem:[#allocation4 + $0x268] sm:$0xff]
    %v246 = vld [vmem:[#allocation4 + $0x270] sm:$0xff]
    %v247 = vld [vmem:[#allocation4 + $0x278] sm:$0xff]
    %v248 = vld [vmem:[#allocation4 + $0x280] sm:$0xff]
    %v249 = vld [vmem:[#allocation4 + $0x288] sm:$0xff]
    %v250 = vld [vmem:[#allocation4 + $0x290] sm:$0xff]
    %v251 = vld [vmem:[#allocation4 + $0x298] sm:$0xff]
    %v252 = vld [vmem:[#allocation4 + $0x2a0] sm:$0xff]
    %v253 = vld [vmem:[#allocation4 + $0x2a8] sm:$0xff]
    %v254 = vld [vmem:[#allocation4 + $0x2b0] sm:$0xff]
    %v255 = vld [vmem:[#allocation4 + $0x2b8] sm:$0xff]
    %v256 = vld [vmem:[#allocation4 + $0x2c0] sm:$0xff]
    %v257 = vld [vmem:[#allocation4 + $0x2c8] sm:$0xff]
    %v258 = vld [vmem:[#allocation4 + $0x2d0] sm:$0xff]
    %v259 = vld [vmem:[#allocation4 + $0x2d8] sm:$0xff]
    %v260 = vld [vmem:[#allocation4 + $0x2e0] sm:$0xff]
    %v261 = vld [vmem:[#allocation4 + $0x2e8] sm:$0xff]
    %v262 = vld [vmem:[#allocation4 + $0x2f0] sm:$0xff]
    %v263 = vld [vmem:[#allocation4 + $0x2f8] sm:$0xff]
    %v264 = vpack.c.bf16 %v149, %v148
    %v265 = vld [vmem:[#allocation6] sm:$0xff]
    %v266 = vld [vmem:[#allocation6 + $0x8] sm:$0xff]
    %v267 = vld [vmem:[#allocation6 + $0x10] sm:$0xff]
    %v268 = vld [vmem:[#allocation6 + $0x18] sm:$0xff]
    %v269 = vld [vmem:[#allocation6 + $0x20] sm:$0xff]
    %v270 = vld [vmem:[#allocation6 + $0x28] sm:$0xff]
    %v271 = vld [vmem:[#allocation6 + $0x30] sm:$0xff]
    %v272 = vld [vmem:[#allocation6 + $0x38] sm:$0xff]
    %v281 = vunpack.c.l.b16 %v265
    %v282 = vunpack.c.h.b16 %v265
    %v283 = vunpack.c.l.b16 %v266
    %v284 = vunpack.c.h.b16 %v266
    %v285 = vunpack.c.l.b16 %v267
    %v286 = vunpack.c.h.b16 %v267
    %v287 = vunpack.c.l.b16 %v268
    %v288 = vunpack.c.h.b16 %v268
    %v289 = vunpack.c.l.b16 %v269
    %v290 = vunpack.c.h.b16 %v269
    %v291 = vunpack.c.l.b16 %v270
    %v292 = vunpack.c.h.b16 %v270
    %v293 = vunpack.c.l.b16 %v271
    %v294 = vunpack.c.h.b16 %v271
    %v295 = vunpack.c.l.b16 %v272
    %v296 = vunpack.c.h.b16 %v272
    %v297 = vpack.c.b16 %v283, %v281
    %v298 = vpack.c.b16 %v284, %v282
    %v299 = vpack.c.b16 %v287, %v285
    %v300 = vpack.c.b16 %v288, %v286
    %v301 = vpack.c.b16 %v291, %v289
    %v302 = vpack.c.b16 %v292, %v290
    %v303 = vpack.c.b16 %v295, %v293
    %v304 = vpack.c.b16 %v296, %v294
    %vm313 = vcmask 523264
    %v315 = vsel %vm313, %v264, 0
    %317 = vmatprep.subr.bf16.mxu0 %v298
    %318 = vmatpush1.bf16.msra.mxu0 %v297
    %319 = vmatprep.subr.bf16.mxu0 %v300
    %320 = vmatpush1.bf16.msra.mxu0 %v299
    %321 = vmatprep.subr.bf16.mxu0 %v302
    %322 = vmatpush1.bf16.msra.mxu0 %v301
    %323 = vmatprep.subr.bf16.mxu0 %v304
    %324 = vmatpush1.bf16.msra.mxu0 %v303
    %325 = vmatprep.subr.bf16.mxu0 0
    %326 = vmatpush1.bf16.msra.mxu0 0
    %327 = vmatprep.subr.bf16.mxu0 0
    %328 = vmatpush1.bf16.msra.mxu0 0
    %329 = vmatprep.subr.bf16.mxu0 0
    %330 = vmatpush1.bf16.msra.mxu0 0
    %331 = vmatprep.subr.bf16.mxu0 0
    %332 = vmatpush1.bf16.msra.mxu0 0
    %333 = vmatprep.subr.bf16.mxu0 0
    %334 = vmatpush1.bf16.msra.mxu0 0
    %335 = vmatprep.subr.bf16.mxu0 0
    %336 = vmatpush1.bf16.msra.mxu0 0
    %337 = vmatprep.subr.bf16.mxu0 0
    %338 = vmatpush1.bf16.msra.mxu0 0
    %339 = vmatprep.subr.bf16.mxu0 0
    %340 = vmatpush1.bf16.msra.mxu0 0
    %341 = vmatprep.subr.bf16.mxu0 0
    %342 = vmatpush1.bf16.msra.mxu0 0
    %343 = vmatprep.subr.bf16.mxu0 0
    %344 = vmatpush1.bf16.msra.mxu0 0
    %345 = vmatprep.subr.bf16.mxu0 0
    %346 = vmatpush1.bf16.msra.mxu0 0
    %347 = vmatprep.subr.bf16.mxu0 0
    %348 = vmatpush1.bf16.msra.mxu0 0
    %349 = vmatprep.mubr.bf16.mxu0 0
    %350 = vmatmul.mubr.bf16.gmra.mrb[0].mxu0 %v315
    %v351 = vpop.f32.mrb[0].mxu0
    %v352 = vadd.f32 0.0, %v351
    %v353 = vpop.f32.mrb[0].mxu0
    %v354 = vadd.f32 0.0, %v353
    %v355 = vpop.f32.mrb[0].mxu0
    %v356 = vadd.f32 0.0, %v355
    %v357 = vpop.f32.mrb[0].mxu0
    %v358 = vadd.f32 0.0, %v357
    %359 = vdwg.mxu0
    %v456 = vunpack.c.l.b16 %v168
    %v457 = vunpack.c.h.b16 %v168
    %v458 = vunpack.c.l.b16 %v169
    %v459 = vunpack.c.h.b16 %v169
    %v460 = vunpack.c.l.b16 %v170
    %v461 = vunpack.c.h.b16 %v170
    %v462 = vunpack.c.l.b16 %v171
    %v463 = vunpack.c.h.b16 %v171
    %v464 = vunpack.c.l.b16 %v172
    %v465 = vunpack.c.h.b16 %v172
    %v466 = vunpack.c.l.b16 %v173
    %v467 = vunpack.c.h.b16 %v173
    %v468 = vunpack.c.l.b16 %v174
    %v469 = vunpack.c.h.b16 %v174
    %v470 = vunpack.c.l.b16 %v175
    %v471 = vunpack.c.h.b16 %v175
    %v472 = vunpack.c.l.b16 %v176
    %v473 = vunpack.c.h.b16 %v176
    %v474 = vunpack.c.l.b16 %v177
    %v475 = vunpack.c.h.b16 %v177
    %v476 = vunpack.c.l.b16 %v178
    %v477 = vunpack.c.h.b16 %v178
    %v478 = vunpack.c.l.b16 %v179
    %v479 = vunpack.c.h.b16 %v179
    %v480 = vunpack.c.l.b16 %v180
    %v481 = vunpack.c.h.b16 %v180
    %v482 = vunpack.c.l.b16 %v181
    %v483 = vunpack.c.h.b16 %v181
    %v484 = vunpack.c.l.b16 %v182
    %v485 = vunpack.c.h.b16 %v182
    %v486 = vunpack.c.l.b16 %v183
    %v487 = vunpack.c.h.b16 %v183
    %v488 = vunpack.c.l.b16 %v184
    %v489 = vunpack.c.h.b16 %v184
    %v490 = vunpack.c.l.b16 %v185
    %v491 = vunpack.c.h.b16 %v185
    %v492 = vunpack.c.l.b16 %v186
    %v493 = vunpack.c.h.b16 %v186
    %v494 = vunpack.c.l.b16 %v187
    %v495 = vunpack.c.h.b16 %v187
    %v496 = vunpack.c.l.b16 %v188
    %v497 = vunpack.c.h.b16 %v188
    %v498 = vunpack.c.l.b16 %v189
    %v499 = vunpack.c.h.b16 %v189
    %v500 = vunpack.c.l.b16 %v190
    %v501 = vunpack.c.h.b16 %v190
    %v502 = vunpack.c.l.b16 %v191
    %v503 = vunpack.c.h.b16 %v191
    %v504 = vunpack.c.l.b16 %v192
    %v505 = vunpack.c.h.b16 %v192
    %v506 = vunpack.c.l.b16 %v193
    %v507 = vunpack.c.h.b16 %v193
    %v508 = vunpack.c.l.b16 %v194
    %v509 = vunpack.c.h.b16 %v194
    %v510 = vunpack.c.l.b16 %v195
    %v511 = vunpack.c.h.b16 %v195
    %v512 = vunpack.c.l.b16 %v196
    %v513 = vunpack.c.h.b16 %v196
    %v514 = vunpack.c.l.b16 %v197
    %v515 = vunpack.c.h.b16 %v197
    %v516 = vunpack.c.l.b16 %v198
    %v517 = vunpack.c.h.b16 %v198
    %v518 = vunpack.c.l.b16 %v199
    %v519 = vunpack.c.h.b16 %v199
    %v520 = vunpack.c.l.b16 %v200
    %v521 = vunpack.c.h.b16 %v200
    %v522 = vunpack.c.l.b16 %v201
    %v523 = vunpack.c.h.b16 %v201
    %v524 = vunpack.c.l.b16 %v202
    %v525 = vunpack.c.h.b16 %v202
    %v526 = vunpack.c.l.b16 %v203
    %v527 = vunpack.c.h.b16 %v203
    %v528 = vunpack.c.l.b16 %v204
    %v529 = vunpack.c.h.b16 %v204
    %v530 = vunpack.c.l.b16 %v205
    %v531 = vunpack.c.h.b16 %v205
    %v532 = vunpack.c.l.b16 %v206
    %v533 = vunpack.c.h.b16 %v206
    %v534 = vunpack.c.l.b16 %v207
    %v535 = vunpack.c.h.b16 %v207
    %v536 = vunpack.c.l.b16 %v208
    %v537 = vunpack.c.h.b16 %v208
    %v538 = vunpack.c.l.b16 %v209
    %v539 = vunpack.c.h.b16 %v209
    %v540 = vunpack.c.l.b16 %v210
    %v541 = vunpack.c.h.b16 %v210
    %v542 = vunpack.c.l.b16 %v211
    %v543 = vunpack.c.h.b16 %v211
    %v544 = vunpack.c.l.b16 %v212
    %v545 = vunpack.c.h.b16 %v212
    %v546 = vunpack.c.l.b16 %v213
    %v547 = vunpack.c.h.b16 %v213
    %v548 = vunpack.c.l.b16 %v214
    %v549 = vunpack.c.h.b16 %v214
    %v550 = vunpack.c.l.b16 %v215
    %v551 = vunpack.c.h.b16 %v215
    %v552 = vunpack.c.l.b16 %v216
    %v553 = vunpack.c.h.b16 %v216
    %v554 = vunpack.c.l.b16 %v217
    %v555 = vunpack.c.h.b16 %v217
    %v556 = vunpack.c.l.b16 %v218
    %v557 = vunpack.c.h.b16 %v218
    %v558 = vunpack.c.l.b16 %v219
    %v559 = vunpack.c.h.b16 %v219
    %v560 = vunpack.c.l.b16 %v220
    %v561 = vunpack.c.h.b16 %v220
    %v562 = vunpack.c.l.b16 %v221
    %v563 = vunpack.c.h.b16 %v221
    %v564 = vunpack.c.l.b16 %v222
    %v565 = vunpack.c.h.b16 %v222
    %v566 = vunpack.c.l.b16 %v223
    %v567 = vunpack.c.h.b16 %v223
    %v568 = vunpack.c.l.b16 %v224
    %v569 = vunpack.c.h.b16 %v224
    %v570 = vunpack.c.l.b16 %v225
    %v571 = vunpack.c.h.b16 %v225
    %v572 = vunpack.c.l.b16 %v226
    %v573 = vunpack.c.h.b16 %v226
    %v574 = vunpack.c.l.b16 %v227
    %v575 = vunpack.c.h.b16 %v227
    %v576 = vunpack.c.l.b16 %v228
    %v577 = vunpack.c.h.b16 %v228
    %v578 = vunpack.c.l.b16 %v229
    %v579 = vunpack.c.h.b16 %v229
    %v580 = vunpack.c.l.b16 %v230
    %v581 = vunpack.c.h.b16 %v230
    %v582 = vunpack.c.l.b16 %v231
    %v583 = vunpack.c.h.b16 %v231
    %v584 = vunpack.c.l.b16 %v232
    %v585 = vunpack.c.h.b16 %v232
    %v586 = vunpack.c.l.b16 %v233
    %v587 = vunpack.c.h.b16 %v233
    %v588 = vunpack.c.l.b16 %v234
    %v589 = vunpack.c.h.b16 %v234
    %v590 = vunpack.c.l.b16 %v235
    %v591 = vunpack.c.h.b16 %v235
    %v592 = vunpack.c.l.b16 %v236
    %v593 = vunpack.c.h.b16 %v236
    %v594 = vunpack.c.l.b16 %v237
    %v595 = vunpack.c.h.b16 %v237
    %v596 = vunpack.c.l.b16 %v238
    %v597 = vunpack.c.h.b16 %v238
    %v598 = vunpack.c.l.b16 %v239
    %v599 = vunpack.c.h.b16 %v239
    %v600 = vunpack.c.l.b16 %v240
    %v601 = vunpack.c.h.b16 %v240
    %v602 = vunpack.c.l.b16 %v241
    %v603 = vunpack.c.h.b16 %v241
    %v604 = vunpack.c.l.b16 %v242
    %v605 = vunpack.c.h.b16 %v242
    %v606 = vunpack.c.l.b16 %v243
    %v607 = vunpack.c.h.b16 %v243
    %v608 = vunpack.c.l.b16 %v244
    %v609 = vunpack.c.h.b16 %v244
    %v610 = vunpack.c.l.b16 %v245
    %v611 = vunpack.c.h.b16 %v245
    %v612 = vunpack.c.l.b16 %v246
    %v613 = vunpack.c.h.b16 %v246
    %v614 = vunpack.c.l.b16 %v247
    %v615 = vunpack.c.h.b16 %v247
    %v616 = vunpack.c.l.b16 %v248
    %v617 = vunpack.c.h.b16 %v248
    %v618 = vunpack.c.l.b16 %v249
    %v619 = vunpack.c.h.b16 %v249
    %v620 = vunpack.c.l.b16 %v250
    %v621 = vunpack.c.h.b16 %v250
    %v622 = vunpack.c.l.b16 %v251
    %v623 = vunpack.c.h.b16 %v251
    %v624 = vunpack.c.l.b16 %v252
    %v625 = vunpack.c.h.b16 %v252
    %v626 = vunpack.c.l.b16 %v253
    %v627 = vunpack.c.h.b16 %v253
    %v628 = vunpack.c.l.b16 %v254
    %v629 = vunpack.c.h.b16 %v254
    %v630 = vunpack.c.l.b16 %v255
    %v631 = vunpack.c.h.b16 %v255
    %v632 = vunpack.c.l.b16 %v256
    %v633 = vunpack.c.h.b16 %v256
    %v634 = vunpack.c.l.b16 %v257
    %v635 = vunpack.c.h.b16 %v257
    %v636 = vunpack.c.l.b16 %v258
    %v637 = vunpack.c.h.b16 %v258
    %v638 = vunpack.c.l.b16 %v259
    %v639 = vunpack.c.h.b16 %v259
    %v640 = vunpack.c.l.b16 %v260
    %v641 = vunpack.c.h.b16 %v260
    %v642 = vunpack.c.l.b16 %v261
    %v643 = vunpack.c.h.b16 %v261
    %v644 = vunpack.c.l.b16 %v262
    %v645 = vunpack.c.h.b16 %v262
    %v646 = vunpack.c.l.b16 %v263
    %v647 = vunpack.c.h.b16 %v263
    %v648 = vpack.c.b16 %v458, %v456
    %v649 = vpack.c.b16 %v459, %v457
    %v650 = vpack.c.b16 %v462, %v460
    %v651 = vpack.c.b16 %v463, %v461
    %v652 = vpack.c.b16 %v466, %v464
    %v653 = vpack.c.b16 %v467, %v465
    %v654 = vpack.c.b16 %v470, %v468
    %v655 = vpack.c.b16 %v471, %v469
    %v656 = vpack.c.b16 %v474, %v472
    %v657 = vpack.c.b16 %v475, %v473
    %v658 = vpack.c.b16 %v478, %v476
    %v659 = vpack.c.b16 %v479, %v477
    %v660 = vpack.c.b16 %v482, %v480
    %v661 = vpack.c.b16 %v483, %v481
    %v662 = vpack.c.b16 %v486, %v484
    %v663 = vpack.c.b16 %v487, %v485
    %v664 = vpack.c.b16 %v490, %v488
    %v665 = vpack.c.b16 %v491, %v489
    %v666 = vpack.c.b16 %v494, %v492
    %v667 = vpack.c.b16 %v495, %v493
    %v668 = vpack.c.b16 %v498, %v496
    %v669 = vpack.c.b16 %v499, %v497
    %v670 = vpack.c.b16 %v502, %v500
    %v671 = vpack.c.b16 %v503, %v501
    %v672 = vpack.c.b16 %v506, %v504
    %v673 = vpack.c.b16 %v507, %v505
    %v674 = vpack.c.b16 %v510, %v508
    %v675 = vpack.c.b16 %v511, %v509
    %v676 = vpack.c.b16 %v514, %v512
    %v677 = vpack.c.b16 %v515, %v513
    %v678 = vpack.c.b16 %v518, %v516
    %v679 = vpack.c.b16 %v519, %v517
    %v680 = vpack.c.b16 %v522, %v520
    %v681 = vpack.c.b16 %v523, %v521
    %v682 = vpack.c.b16 %v526, %v524
    %v683 = vpack.c.b16 %v527, %v525
    %v684 = vpack.c.b16 %v530, %v528
    %v685 = vpack.c.b16 %v531, %v529
    %v686 = vpack.c.b16 %v534, %v532
    %v687 = vpack.c.b16 %v535, %v533
    %v688 = vpack.c.b16 %v538, %v536
    %v689 = vpack.c.b16 %v539, %v537
    %v690 = vpack.c.b16 %v542, %v540
    %v691 = vpack.c.b16 %v543, %v541
    %v692 = vpack.c.b16 %v546, %v544
    %v693 = vpack.c.b16 %v547, %v545
    %v694 = vpack.c.b16 %v550, %v548
    %v695 = vpack.c.b16 %v551, %v549
    %v696 = vpack.c.b16 %v554, %v552
    %v697 = vpack.c.b16 %v555, %v553
    %v698 = vpack.c.b16 %v558, %v556
    %v699 = vpack.c.b16 %v559, %v557
    %v700 = vpack.c.b16 %v562, %v560
    %v701 = vpack.c.b16 %v563, %v561
    %v702 = vpack.c.b16 %v566, %v564
    %v703 = vpack.c.b16 %v567, %v565
    %v704 = vpack.c.b16 %v570, %v568
    %v705 = vpack.c.b16 %v571, %v569
    %v706 = vpack.c.b16 %v574, %v572
    %v707 = vpack.c.b16 %v575, %v573
    %v708 = vpack.c.b16 %v578, %v576
    %v709 = vpack.c.b16 %v579, %v577
    %v710 = vpack.c.b16 %v582, %v580
    %v711 = vpack.c.b16 %v583, %v581
    %v712 = vpack.c.b16 %v586, %v584
    %v713 = vpack.c.b16 %v587, %v585
    %v714 = vpack.c.b16 %v590, %v588
    %v715 = vpack.c.b16 %v591, %v589
    %v716 = vpack.c.b16 %v594, %v592
    %v717 = vpack.c.b16 %v595, %v593
    %v718 = vpack.c.b16 %v598, %v596
    %v719 = vpack.c.b16 %v599, %v597
    %v720 = vpack.c.b16 %v602, %v600
    %v721 = vpack.c.b16 %v603, %v601
    %v722 = vpack.c.b16 %v606, %v604
    %v723 = vpack.c.b16 %v607, %v605
    %v724 = vpack.c.b16 %v610, %v608
    %v725 = vpack.c.b16 %v611, %v609
    %v726 = vpack.c.b16 %v614, %v612
    %v727 = vpack.c.b16 %v615, %v613
    %v728 = vpack.c.b16 %v618, %v616
    %v729 = vpack.c.b16 %v619, %v617
    %v730 = vpack.c.b16 %v622, %v620
    %v731 = vpack.c.b16 %v623, %v621
    %v732 = vpack.c.b16 %v626, %v624
    %v733 = vpack.c.b16 %v627, %v625
    %v734 = vpack.c.b16 %v630, %v628
    %v735 = vpack.c.b16 %v631, %v629
    %v736 = vpack.c.b16 %v634, %v632
    %v737 = vpack.c.b16 %v635, %v633
    %v738 = vpack.c.b16 %v638, %v636
    %v739 = vpack.c.b16 %v639, %v637
    %v740 = vpack.c.b16 %v642, %v640
    %v741 = vpack.c.b16 %v643, %v641
    %v742 = vpack.c.b16 %v646, %v644
    %v743 = vpack.c.b16 %v647, %v645
    %840 = vmatprep.subr.bf16.mxu0 %v649
    %841 = vmatpush1.bf16.msra.mxu0 %v648
    %842 = vmatprep.subr.bf16.mxu0 %v651
    %843 = vmatpush1.bf16.msra.mxu0 %v650
    %844 = vmatprep.subr.bf16.mxu0 %v653
    %845 = vmatpush1.bf16.msra.mxu0 %v652
    %846 = vmatprep.subr.bf16.mxu0 %v655
    %847 = vmatpush1.bf16.msra.mxu0 %v654
    %848 = vmatprep.subr.bf16.mxu0 %v657
    %849 = vmatpush1.bf16.msra.mxu0 %v656
    %850 = vmatprep.subr.bf16.mxu0 %v659
    %851 = vmatpush1.bf16.msra.mxu0 %v658
    %852 = vmatprep.subr.bf16.mxu0 %v661
    %853 = vmatpush1.bf16.msra.mxu0 %v660
    %854 = vmatprep.subr.bf16.mxu0 %v663
    %855 = vmatpush1.bf16.msra.mxu0 %v662
    %856 = vmatprep.subr.bf16.mxu0 %v665
    %857 = vmatpush1.bf16.msra.mxu0 %v664
    %858 = vmatprep.subr.bf16.mxu0 %v667
    %859 = vmatpush1.bf16.msra.mxu0 %v666
    %860 = vmatprep.subr.bf16.mxu0 %v669
    %861 = vmatpush1.bf16.msra.mxu0 %v668
    %862 = vmatprep.subr.bf16.mxu0 %v671
    %863 = vmatpush1.bf16.msra.mxu0 %v670
    %864 = vmatprep.subr.bf16.mxu0 %v673
    %865 = vmatpush1.bf16.msra.mxu0 %v672
    %866 = vmatprep.subr.bf16.mxu0 %v675
    %867 = vmatpush1.bf16.msra.mxu0 %v674
    %868 = vmatprep.subr.bf16.mxu0 %v677
    %869 = vmatpush1.bf16.msra.mxu0 %v676
    %870 = vmatprep.subr.bf16.mxu0 %v679
    %871 = vmatpush1.bf16.msra.mxu0 %v678
    %872 = vmatprep.mubr.bf16.mxu0 %v163
    %873 = vmatmul.mubr.bf16.gmra.mrb[0].mxu0 %v162
    %v874 = vpop.f32.mrb[0].mxu0
    %v875 = vadd.f32 %v352, %v874
    %v876 = vpop.f32.mrb[0].mxu0
    %v877 = vadd.f32 %v354, %v876
    %v878 = vpop.f32.mrb[0].mxu0
    %v879 = vadd.f32 %v356, %v878
    %v880 = vpop.f32.mrb[0].mxu0
    %v881 = vadd.f32 %v358, %v880
    %882 = vdwg.mxu0
    %883 = vmatprep.subr.bf16.mxu0 %v681
    %884 = vmatpush1.bf16.msra.mxu0 %v680
    %885 = vmatprep.subr.bf16.mxu0 %v683
    %886 = vmatpush1.bf16.msra.mxu0 %v682
    %887 = vmatprep.subr.bf16.mxu0 %v685
    %888 = vmatpush1.bf16.msra.mxu0 %v684
    %889 = vmatprep.subr.bf16.mxu0 %v687
    %890 = vmatpush1.bf16.msra.mxu0 %v686
    %891 = vmatprep.subr.bf16.mxu0 %v689
    %892 = vmatpush1.bf16.msra.mxu0 %v688
    %893 = vmatprep.subr.bf16.mxu0 %v691
    %894 = vmatpush1.bf16.msra.mxu0 %v690
    %895 = vmatprep.subr.bf16.mxu0 %v693
    %896 = vmatpush1.bf16.msra.mxu0 %v692
    %897 = vmatprep.subr.bf16.mxu0 %v695
    %898 = vmatpush1.bf16.msra.mxu0 %v694
    %899 = vmatprep.subr.bf16.mxu0 %v697
    %900 = vmatpush1.bf16.msra.mxu0 %v696
    %901 = vmatprep.subr.bf16.mxu0 %v699
    %902 = vmatpush1.bf16.msra.mxu0 %v698
    %903 = vmatprep.subr.bf16.mxu0 %v701
    %904 = vmatpush1.bf16.msra.mxu0 %v700
    %905 = vmatprep.subr.bf16.mxu0 %v703
    %906 = vmatpush1.bf16.msra.mxu0 %v702
    %907 = vmatprep.subr.bf16.mxu0 %v705
    %908 = vmatpush1.bf16.msra.mxu0 %v704
    %909 = vmatprep.subr.bf16.mxu0 %v707
    %910 = vmatpush1.bf16.msra.mxu0 %v706
    %911 = vmatprep.subr.bf16.mxu0 %v709
    %912 = vmatpush1.bf16.msra.mxu0 %v708
    %913 = vmatprep.subr.bf16.mxu0 %v711
    %914 = vmatpush1.bf16.msra.mxu0 %v710
    %915 = vmatprep.mubr.bf16.mxu0 %v165
    %916 = vmatmul.mubr.bf16.gmra.mrb[0].mxu0 %v164
    %v917 = vpop.f32.mrb[0].mxu0
    %v918 = vadd.f32 %v875, %v917
    %v919 = vpop.f32.mrb[0].mxu0
    %v920 = vadd.f32 %v877, %v919
    %v921 = vpop.f32.mrb[0].mxu0
    %v922 = vadd.f32 %v879, %v921
    %v923 = vpop.f32.mrb[0].mxu0
    %v924 = vadd.f32 %v881, %v923
    %925 = vdwg.mxu0
    %926 = vmatprep.subr.bf16.mxu0 %v713
    %927 = vmatpush1.bf16.msra.mxu0 %v712
    %928 = vmatprep.subr.bf16.mxu0 %v715
    %929 = vmatpush1.bf16.msra.mxu0 %v714
    %930 = vmatprep.subr.bf16.mxu0 %v717
    %931 = vmatpush1.bf16.msra.mxu0 %v716
    %932 = vmatprep.subr.bf16.mxu0 %v719
    %933 = vmatpush1.bf16.msra.mxu0 %v718
    %934 = vmatprep.subr.bf16.mxu0 %v721
    %935 = vmatpush1.bf16.msra.mxu0 %v720
    %936 = vmatprep.subr.bf16.mxu0 %v723
    %937 = vmatpush1.bf16.msra.mxu0 %v722
    %938 = vmatprep.subr.bf16.mxu0 %v725
    %939 = vmatpush1.bf16.msra.mxu0 %v724
    %940 = vmatprep.subr.bf16.mxu0 %v727
    %941 = vmatpush1.bf16.msra.mxu0 %v726
    %942 = vmatprep.subr.bf16.mxu0 %v729
    %943 = vmatpush1.bf16.msra.mxu0 %v728
    %944 = vmatprep.subr.bf16.mxu0 %v731
    %945 = vmatpush1.bf16.msra.mxu0 %v730
    %946 = vmatprep.subr.bf16.mxu0 %v733
    %947 = vmatpush1.bf16.msra.mxu0 %v732
    %948 = vmatprep.subr.bf16.mxu0 %v735
    %949 = vmatpush1.bf16.msra.mxu0 %v734
    %950 = vmatprep.subr.bf16.mxu0 %v737
    %951 = vmatpush1.bf16.msra.mxu0 %v736
    %952 = vmatprep.subr.bf16.mxu0 %v739
    %953 = vmatpush1.bf16.msra.mxu0 %v738
    %954 = vmatprep.subr.bf16.mxu0 %v741
    %955 = vmatpush1.bf16.msra.mxu0 %v740
    %956 = vmatprep.subr.bf16.mxu0 %v743
    %957 = vmatpush1.bf16.msra.mxu0 %v742
    %958 = vmatprep.mubr.bf16.mxu0 %v167
    %959 = vmatmul.mubr.bf16.gmra.mrb[0].mxu0 %v166
    %v960 = vpop.f32.mrb[0].mxu0
    %v961 = vadd.f32 %v918, %v960
    %v962 = vpop.f32.mrb[0].mxu0
    %v963 = vadd.f32 %v920, %v962
    %v964 = vpop.f32.mrb[0].mxu0
    %v965 = vadd.f32 %v922, %v964
    %v966 = vpop.f32.mrb[0].mxu0
    %v967 = vadd.f32 %v924, %v966
    %968 = vdwg.mxu0
    %v969 = vld [vmem:[%s6] sm:$0x3]
    %v971 = vlaneseq
    %v972 = vshrl.u32 %v971, 7
    %v973 = vsub.s32 0, %v972
    %v974 = vrot.slane %v969, %v973
    %v975 = vlaneseq
    %v976 = vshrl.u32 %v975, 7
    %v977 = vsub.s32 1, %v976
    %v978 = vrot.slane %v969, %v977
    %v981 = vadd.f32 %v961, %v974
    %v982 = vadd.f32 %v963, %v978
    %v983 = vadd.f32 %v965, %v974
    %v984 = vadd.f32 %v967, %v978
    %v985 = vmax.f32 %v981, 0.0
    %v986 = vmax.f32 %v982, 0.0
    %v987 = vmax.f32 %v983, 0.0
    %v988 = vmax.f32 %v984, 0.0
    %v989 = vpack.c.bf16 %v987, %v985
    %v990 = vpack.c.bf16 %v988, %v986
    %v991 = vld [vmem:[#allocation7] sm:$0xf]
    %v992 = vld [vmem:[#allocation7 + $0x4] sm:$0xf]
    %v993 = vld [vmem:[#allocation7 + $0x8] sm:$0xf]
    %v994 = vld [vmem:[#allocation7 + $0xc] sm:$0xf]
    %v995 = vld [vmem:[#allocation7 + $0x10] sm:$0xf]
    %v996 = vld [vmem:[#allocation7 + $0x14] sm:$0xf]
    %v997 = vld [vmem:[#allocation7 + $0x18] sm:$0xf]
    %v998 = vld [vmem:[#allocation7 + $0x1c] sm:$0xf]
    %v999 = vld [vmem:[#allocation7 + $0x20] sm:$0xf]
    %v1000 = vld [vmem:[#allocation7 + $0x24] sm:$0xf]
    %v1001 = vld [vmem:[#allocation7 + $0x28] sm:$0xf]
    %v1002 = vld [vmem:[#allocation7 + $0x2c] sm:$0xf]
    %v1003 = vld [vmem:[#allocation7 + $0x30] sm:$0xf]
    %v1004 = vld [vmem:[#allocation7 + $0x34] sm:$0xf]
    %v1005 = vld [vmem:[#allocation7 + $0x38] sm:$0xf]
    %v1006 = vld [vmem:[#allocation7 + $0x3c] sm:$0xf]
    %v1007 = vld [vmem:[#allocation7 + $0x40] sm:$0xf]
    %v1008 = vld [vmem:[#allocation7 + $0x44] sm:$0xf]
    %v1009 = vld [vmem:[#allocation7 + $0x48] sm:$0xf]
    %v1010 = vld [vmem:[#allocation7 + $0x4c] sm:$0xf]
    %v1011 = vld [vmem:[#allocation7 + $0x50] sm:$0xf]
    %v1012 = vld [vmem:[#allocation7 + $0x54] sm:$0xf]
    %v1013 = vld [vmem:[#allocation7 + $0x58] sm:$0xf]
    %v1014 = vld [vmem:[#allocation7 + $0x5c] sm:$0xf]
    %v1015 = vld [vmem:[#allocation7 + $0x60] sm:$0xf]
    %v1016 = vld [vmem:[#allocation7 + $0x64] sm:$0xf]
    %v1017 = vld [vmem:[#allocation7 + $0x68] sm:$0xf]
    %v1018 = vld [vmem:[#allocation7 + $0x6c] sm:$0xf]
    %v1019 = vld [vmem:[#allocation7 + $0x70] sm:$0xf]
    %v1020 = vld [vmem:[#allocation7 + $0x74] sm:$0xf]
    %v1021 = vld [vmem:[#allocation7 + $0x78] sm:$0xf]
    %v1022 = vld [vmem:[#allocation7 + $0x7c] sm:$0xf]
    %v1023 = vld [vmem:[%s8] sm:$0x1]
    %v1025 = vlaneseq
    %v1026 = vshrl.u32 %v1025, 7
    %v1027 = vsub.s32 0, %v1026
    %v1028 = vrot.slane %v1023, %v1027
    %v1062 = vunpack.c.l.b16 %v991
    %v1063 = vunpack.c.l.b16 %v992
    %v1064 = vunpack.c.l.b16 %v993
    %v1065 = vunpack.c.l.b16 %v994
    %v1066 = vunpack.c.l.b16 %v995
    %v1067 = vunpack.c.l.b16 %v996
    %v1068 = vunpack.c.l.b16 %v997
    %v1069 = vunpack.c.l.b16 %v998
    %v1070 = vunpack.c.l.b16 %v999
    %v1071 = vunpack.c.l.b16 %v1000
    %v1072 = vunpack.c.l.b16 %v1001
    %v1073 = vunpack.c.l.b16 %v1002
    %v1074 = vunpack.c.l.b16 %v1003
    %v1075 = vunpack.c.l.b16 %v1004
    %v1076 = vunpack.c.l.b16 %v1005
    %v1077 = vunpack.c.l.b16 %v1006
    %v1078 = vunpack.c.l.b16 %v1007
    %v1079 = vunpack.c.l.b16 %v1008
    %v1080 = vunpack.c.l.b16 %v1009
    %v1081 = vunpack.c.l.b16 %v1010
    %v1082 = vunpack.c.l.b16 %v1011
    %v1083 = vunpack.c.l.b16 %v1012
    %v1084 = vunpack.c.l.b16 %v1013
    %v1085 = vunpack.c.l.b16 %v1014
    %v1086 = vunpack.c.l.b16 %v1015
    %v1087 = vunpack.c.l.b16 %v1016
    %v1088 = vunpack.c.l.b16 %v1017
    %v1089 = vunpack.c.l.b16 %v1018
    %v1090 = vunpack.c.l.b16 %v1019
    %v1091 = vunpack.c.l.b16 %v1020
    %v1092 = vunpack.c.l.b16 %v1021
    %v1093 = vunpack.c.l.b16 %v1022
    %v1094 = vpack.c.b16 %v1063, %v1062
    %v1095 = vpack.c.b16 %v1065, %v1064
    %v1096 = vpack.c.b16 %v1067, %v1066
    %v1097 = vpack.c.b16 %v1069, %v1068
    %v1098 = vpack.c.b16 %v1071, %v1070
    %v1099 = vpack.c.b16 %v1073, %v1072
    %v1100 = vpack.c.b16 %v1075, %v1074
    %v1101 = vpack.c.b16 %v1077, %v1076
    %v1102 = vpack.c.b16 %v1079, %v1078
    %v1103 = vpack.c.b16 %v1081, %v1080
    %v1104 = vpack.c.b16 %v1083, %v1082
    %v1105 = vpack.c.b16 %v1085, %v1084
    %v1106 = vpack.c.b16 %v1087, %v1086
    %v1107 = vpack.c.b16 %v1089, %v1088
    %v1108 = vpack.c.b16 %v1091, %v1090
    %v1109 = vpack.c.b16 %v1093, %v1092
    %1126 = vmatprep.subr.bf16.mxu0 0
    %1127 = vmatpush1.bf16.msra.mxu0 %v1094
    %1128 = vmatprep.subr.bf16.mxu0 0
    %1129 = vmatpush1.bf16.msra.mxu0 %v1095
    %1130 = vmatprep.subr.bf16.mxu0 0
    %1131 = vmatpush1.bf16.msra.mxu0 %v1096
    %1132 = vmatprep.subr.bf16.mxu0 0
    %1133 = vmatpush1.bf16.msra.mxu0 %v1097
    %1134 = vmatprep.subr.bf16.mxu0 0
    %1135 = vmatpush1.bf16.msra.mxu0 %v1098
    %1136 = vmatprep.subr.bf16.mxu0 0
    %1137 = vmatpush1.bf16.msra.mxu0 %v1099
    %1138 = vmatprep.subr.bf16.mxu0 0
    %1139 = vmatpush1.bf16.msra.mxu0 %v1100
    %1140 = vmatprep.subr.bf16.mxu0 0
    %1141 = vmatpush1.bf16.msra.mxu0 %v1101
    %1142 = vmatprep.subr.bf16.mxu0 0
    %1143 = vmatpush1.bf16.msra.mxu0 %v1102
    %1144 = vmatprep.subr.bf16.mxu0 0
    %1145 = vmatpush1.bf16.msra.mxu0 %v1103
    %1146 = vmatprep.subr.bf16.mxu0 0
    %1147 = vmatpush1.bf16.msra.mxu0 %v1104
    %1148 = vmatprep.subr.bf16.mxu0 0
    %1149 = vmatpush1.bf16.msra.mxu0 %v1105
    %1150 = vmatprep.subr.bf16.mxu0 0
    %1151 = vmatpush1.bf16.msra.mxu0 %v1106
    %1152 = vmatprep.subr.bf16.mxu0 0
    %1153 = vmatpush1.bf16.msra.mxu0 %v1107
    %1154 = vmatprep.subr.bf16.mxu0 0
    %1155 = vmatpush1.bf16.msra.mxu0 %v1108
    %1156 = vmatprep.subr.bf16.mxu0 0
    %1157 = vmatpush1.bf16.msra.mxu0 %v1109
    %1158 = vmatprep.mubr.bf16.mxu0 %v990
    %1159 = vmatmul.mubr.bf16.gmra.mrb[0].mxu0 %v989
    %v1160 = vpop.f32.mrb[0].mxu0
    %v1161 = vadd.f32 %v1028, %v1160
    %v1162 = vpop.f32.mrb[0].mxu0
    %v1163 = vpop.f32.mrb[0].mxu0
    %v1164 = vadd.f32 %v1028, %v1163
    %v1165 = vpop.f32.mrb[0].mxu0
    %1166 = vdwg.mxu0
    %vm1167 = vcmask 64512
    %1168 = vst.msk [vmem:[%s9] sm:$0xff] %vm1167, %v1161
    %1169 = vst.msk [vmem:[%s9 + $0x8] sm:$0xff] %vm1167, %v1164
    // Predicated region
    $region54: #{tpu_custom_call.1} parent=1 // pred_check
      _
    $region55: #{tpu_custom_call.1} parent=1 // pred_check_branch
      %1171 = sbr.rel (0) target = $region57
    $region56: #{tpu_custom_call.1} parent=1 // pred_region
      _
    $region57: #{tpu_custom_call.1} parent=1 // pred_fallthru
      _
    // Predicated region
    $region58: #{tpu_custom_call.1} parent=1 // pred_check
      _
    $region59: #{tpu_custom_call.1} parent=1 // pred_check_branch
      %1173 = sbr.rel (0) target = $region61
    $region60: #{tpu_custom_call.1} parent=1 // pred_region
      _
    $region61: #{tpu_custom_call.1} parent=1 // pred_fallthru
      _
    %1174 = vsyncpa [#allocation3], 1
    %1175 = vsyncpa [#allocation5], 1
    %1176 = vsyncpa [#allocation8], 1

</llo_original>
